<compile_context>
chip_gen: v5e
topology: v5e:2x2
jax: 0.10.0
libtpu: 0.0.40
codegen_flags: <defaults>
</compile_context>

<pallas_src>
import functools

import jax
import jax.numpy as jnp
from jax.experimental import pallas as pl
from jax.experimental.pallas import tpu as pltpu


def make_divisible(value, divisor, min_value=None, rounding_down_protect=True):
    if min_value is None:
        min_value = divisor
    new_value = max(min_value, int(value + divisor / 2) // divisor * divisor)
    if rounding_down_protect and new_value < 0.9 * value:
        new_value += divisor
    return int(new_value)


def _spatial_tile(hw, in_ch, out_ch, dtype_bytes=4, vmem_budget=8 * 1024 * 1024):
    """Largest 128-multiple tile dividing hw whose double-buffered blocks fit budget."""
    if hw % 128 != 0:
        # TODO(synk): pad/repack the spatial axis to 128 alignment when H*W is not a
        # multiple of 128 (avoids masked partial stores); full-extent block for now.
        return hw
    per_col = (in_ch + out_ch) * dtype_bytes * 2   # in + out blocks, double buffered
    max_tile = max(128, (vmem_budget // per_col) // 128 * 128)
    ts = min(max_tile, hw)
    ts -= ts % 128
    while ts > 128 and hw % ts != 0:
        ts -= 128
    return ts


def _se_kernel(x_ref, w1_ref, b1_ref, w2_ref, b2_ref, o_ref, *, mid):
    # x_ref : (C, TS)     channels x spatial (lane-dense spatial)
    # w1_ref: (mid, 1)    squeeze conv weight (in_channels == 1)
    # b1_ref: (mid, 1)    squeeze conv bias
    # w2_ref: (out, mid)  expand conv weight
    # b2_ref: (out, 1)    expand conv bias
    # o_ref : (out, TS)
    x = x_ref[...].astype(jnp.float32)
    m = jnp.mean(x, axis=0, keepdims=True)                           # (1, TS) sublane reduce
    w1 = w1_ref[...].astype(jnp.float32)
    b1 = b1_ref[...].astype(jnp.float32)
    h = jnp.maximum(w1 * m + b1, 0.0)                                # (mid, TS) rank-1 FMA
    # Expand 1x1 conv: tiny static contraction, unrolled on the VPU (exact f32).
    acc = w2_ref[:, 0:1].astype(jnp.float32) * h[0:1, :]             # (out, TS)
    for j in range(1, mid):
        acc = acc + w2_ref[:, j:j + 1].astype(jnp.float32) * h[j:j + 1, :]
    z = acc + b2_ref[...].astype(jnp.float32)
    g = 1.0 / (1.0 + jnp.exp(-z))                                    # sigmoid (EUP)
    o_ref[...] = (m * g).astype(o_ref.dtype)


def squeeze_excitation(x, w1, b1, w2, b2):
    """x: (N,C,H,W); w1: (mid,1,1,1); b1: (mid,); w2: (out,mid,1,1); b2: (out,)."""
    N, C, H, W = x.shape
    HW = H * W
    mid = w1.shape[0]
    out_ch = w2.shape[0]

    w1c = w1.reshape(mid, 1)
    b1c = b1.reshape(mid, 1)
    w2c = w2.reshape(out_ch, mid)
    b2c = b2.reshape(out_ch, 1)

    x3 = x.reshape(N, C, HW)
    TS = _spatial_tile(HW, C, out_ch, dtype_bytes=jnp.dtype(x.dtype).itemsize)
    grid = (N, HW // TS)

    out3 = pl.pallas_call(
        functools.partial(_se_kernel, mid=mid),
        out_shape=jax.ShapeDtypeStruct((N, out_ch, HW), x.dtype),
        grid=grid,
        in_specs=[
            pl.BlockSpec((None, C, TS), lambda n, s: (n, 0, s)),
            pl.BlockSpec((mid, 1), lambda n, s: (0, 0)),
            pl.BlockSpec((mid, 1), lambda n, s: (0, 0)),
            pl.BlockSpec((out_ch, mid), lambda n, s: (0, 0)),
            pl.BlockSpec((out_ch, 1), lambda n, s: (0, 0)),
        ],
        out_specs=pl.BlockSpec((None, out_ch, TS), lambda n, s: (n, 0, s)),
        compiler_params=pltpu.CompilerParams(
            dimension_semantics=("parallel", "parallel"),
        ),
    )(x3, w1c, b1c, w2c, b2c)

    return out3.reshape(N, out_ch, H, W)


if __name__ == "__main__":
    key = jax.random.PRNGKey(0)
    k_x, k_w1, k_b1, k_w2, k_b2 = jax.random.split(key, 5)

    N, C, H, W = 2, 4, 16, 16
    input_channels, output_channels = C, 4
    sequeeze_ratio, division = 0.25, 4
    mid = make_divisible(max(1, input_channels * sequeeze_ratio), divisor=division)

    x = jax.random.normal(k_x, (N, C, H, W), dtype=jnp.float32)
    w1 = jax.random.normal(k_w1, (mid, 1, 1, 1), dtype=jnp.float32) * 0.5
    b1 = jax.random.normal(k_b1, (mid,), dtype=jnp.float32) * 0.1
    w2 = jax.random.normal(k_w2, (output_channels, mid, 1, 1), dtype=jnp.float32) * 0.5
    b2 = jax.random.normal(k_b2, (output_channels,), dtype=jnp.float32) * 0.1

    y = jax.jit(squeeze_excitation)(x, w1, b1, w2, b2)
    jax.block_until_ready(y)

    # Pure-JAX reference of the PyTorch forward (exact f32 contraction, no MXU passes).
    m_ref = jnp.mean(x, axis=1, keepdims=True)                                    # (N,1,H,W)
    h_ref = jnp.maximum(
        m_ref * w1.reshape(1, mid, 1, 1) + b1.reshape(1, mid, 1, 1), 0.0)         # (N,mid,H,W)
    z_ref = (h_ref[:, None, :, :, :]
             * w2.reshape(1, output_channels, mid, 1, 1)).sum(axis=2) \
            + b2.reshape(1, output_channels, 1, 1)                                # (N,out,H,W)
    g_ref = 1.0 / (1.0 + jnp.exp(-z_ref))
    y_ref = m_ref * g_ref

    assert y.shape == (N, output_channels, H, W)
    max_err = float(jnp.max(jnp.abs(y - y_ref)))
    assert jnp.allclose(y, y_ref, atol=1e-5, rtol=1e-5), max_err

    print("KERNEL_OK")
</pallas_src>

<mosaic_0001>
module attributes {stable_mosaic.version = 11 : i64} {
  func.func @_se_kernel(%arg0: i32, %arg1: i32, %arg2: memref<1x4x256xf32, #tpu.memory_space<vmem>>, %arg3: memref<4x1xf32, #tpu.memory_space<vmem>>, %arg4: memref<4x1xf32, #tpu.memory_space<vmem>>, %arg5: memref<4x4xf32, #tpu.memory_space<vmem>>, %arg6: memref<4x1xf32, #tpu.memory_space<vmem>>, %arg7: memref<1x4x256xf32, #tpu.memory_space<vmem>>) attributes {dimension_semantics = [#tpu.dimension_semantics<parallel>, #tpu.dimension_semantics<parallel>], iteration_bounds = array<i64: 2, 1>, scalar_prefetch = 0 : i64, scratch_operands = 0 : i64, tpu.core_type = #tpu.core_type<tc>, window_params = [{transform_indices = @transform_0, window_bounds = array<i64: 1, 4, 256>}, {pipeline_mode = #tpu.pipeline_mode<synchronous>, transform_indices = @transform_1, window_bounds = array<i64: 4, 1>}, {pipeline_mode = #tpu.pipeline_mode<synchronous>, transform_indices = @transform_2, window_bounds = array<i64: 4, 1>}, {pipeline_mode = #tpu.pipeline_mode<synchronous>, transform_indices = @transform_3, window_bounds = array<i64: 4, 4>}, {pipeline_mode = #tpu.pipeline_mode<synchronous>, transform_indices = @transform_4, window_bounds = array<i64: 4, 1>}, {transform_indices = @transform_5, window_bounds = array<i64: 1, 4, 256>}]} {
    %c0 = arith.constant 0 : index
    %c0_0 = arith.constant 0 : index
    %c0_1 = arith.constant 0 : index
    %0 = vector.load %arg2[%c0, %c0_0, %c0_1] : memref<1x4x256xf32, #tpu.memory_space<vmem>>, vector<1x4x256xf32>
    %1 = vector.shape_cast %0 : vector<1x4x256xf32> to vector<4x256xf32>
    %cst = arith.constant dense<0.000000e+00> : vector<256xf32>
    %2 = vector.multi_reduction <add>, %1, %cst [0] : vector<4x256xf32> to vector<256xf32>
    %3 = vector.shape_cast %2 : vector<256xf32> to vector<1x256xf32>
    %cst_2 = arith.constant 4.000000e+00 : f32
    %4 = vector.broadcast %cst_2 : f32 to vector<1x256xf32>
    %5 = arith.divf %3, %4 : vector<1x256xf32>
    %c0_3 = arith.constant 0 : index
    %c0_4 = arith.constant 0 : index
    %6 = vector.load %arg3[%c0_3, %c0_4] : memref<4x1xf32, #tpu.memory_space<vmem>>, vector<4x1xf32>
    %c0_5 = arith.constant 0 : index
    %c0_6 = arith.constant 0 : index
    %7 = vector.load %arg4[%c0_5, %c0_6] : memref<4x1xf32, #tpu.memory_space<vmem>>, vector<4x1xf32>
    %8 = vector.broadcast %6 : vector<4x1xf32> to vector<4x256xf32>
    %9 = vector.broadcast %5 : vector<1x256xf32> to vector<4x256xf32>
    %10 = arith.mulf %8, %9 : vector<4x256xf32>
    %11 = vector.broadcast %7 : vector<4x1xf32> to vector<4x256xf32>
    %12 = arith.addf %10, %11 : vector<4x256xf32>
    %cst_7 = arith.constant 0.000000e+00 : f32
    %13 = vector.broadcast %cst_7 : f32 to vector<4x256xf32>
    %14 = arith.maximumf %12, %13 : vector<4x256xf32>
    %c0_8 = arith.constant 0 : index
    %c0_9 = arith.constant 0 : index
    %15 = vector.load %arg5[%c0_8, %c0_9] : memref<4x4xf32, #tpu.memory_space<vmem>>, vector<4x1xf32>
    %16 = vector.extract_strided_slice %14 {offsets = [0, 0], sizes = [1, 256], strides = [1, 1]} : vector<4x256xf32> to vector<1x256xf32>
    %17 = vector.broadcast %15 : vector<4x1xf32> to vector<4x256xf32>
    %18 = vector.broadcast %16 : vector<1x256xf32> to vector<4x256xf32>
    %19 = arith.mulf %17, %18 : vector<4x256xf32>
    %c0_10 = arith.constant 0 : index
    %c1 = arith.constant 1 : index
    %20 = vector.load %arg5[%c0_10, %c1] : memref<4x4xf32, #tpu.memory_space<vmem>>, vector<4x1xf32>
    %21 = vector.extract_strided_slice %14 {offsets = [1, 0], sizes = [1, 256], strides = [1, 1]} : vector<4x256xf32> to vector<1x256xf32>
    %22 = vector.broadcast %20 : vector<4x1xf32> to vector<4x256xf32>
    %23 = vector.broadcast %21 : vector<1x256xf32> to vector<4x256xf32>
    %24 = arith.mulf %22, %23 : vector<4x256xf32>
    %25 = arith.addf %19, %24 : vector<4x256xf32>
    %c0_11 = arith.constant 0 : index
    %c2 = arith.constant 2 : index
    %26 = vector.load %arg5[%c0_11, %c2] : memref<4x4xf32, #tpu.memory_space<vmem>>, vector<4x1xf32>
    %27 = vector.extract_strided_slice %14 {offsets = [2, 0], sizes = [1, 256], strides = [1, 1]} : vector<4x256xf32> to vector<1x256xf32>
    %28 = vector.broadcast %26 : vector<4x1xf32> to vector<4x256xf32>
    %29 = vector.broadcast %27 : vector<1x256xf32> to vector<4x256xf32>
    %30 = arith.mulf %28, %29 : vector<4x256xf32>
    %31 = arith.addf %25, %30 : vector<4x256xf32>
    %c0_12 = arith.constant 0 : index
    %c3 = arith.constant 3 : index
    %32 = vector.load %arg5[%c0_12, %c3] : memref<4x4xf32, #tpu.memory_space<vmem>>, vector<4x1xf32>
    %33 = vector.extract_strided_slice %14 {offsets = [3, 0], sizes = [1, 256], strides = [1, 1]} : vector<4x256xf32> to vector<1x256xf32>
    %34 = vector.broadcast %32 : vector<4x1xf32> to vector<4x256xf32>
    %35 = vector.broadcast %33 : vector<1x256xf32> to vector<4x256xf32>
    %36 = arith.mulf %34, %35 : vector<4x256xf32>
    %37 = arith.addf %31, %36 : vector<4x256xf32>
    %c0_13 = arith.constant 0 : index
    %c0_14 = arith.constant 0 : index
    %38 = vector.load %arg6[%c0_13, %c0_14] : memref<4x1xf32, #tpu.memory_space<vmem>>, vector<4x1xf32>
    %39 = vector.broadcast %38 : vector<4x1xf32> to vector<4x256xf32>
    %40 = arith.addf %37, %39 : vector<4x256xf32>
    %cst_15 = arith.constant 0.000000e+00 : f32
    %41 = vector.broadcast %cst_15 : f32 to vector<4x256xf32>
    %42 = arith.subf %41, %40 : vector<4x256xf32>
    %43 = math.exp %42 : vector<4x256xf32>
    %cst_16 = arith.constant 1.000000e+00 : f32
    %44 = vector.broadcast %cst_16 : f32 to vector<4x256xf32>
    %45 = arith.addf %44, %43 : vector<4x256xf32>
    %cst_17 = arith.constant 1.000000e+00 : f32
    %46 = vector.broadcast %cst_17 : f32 to vector<4x256xf32>
    %47 = arith.divf %46, %45 : vector<4x256xf32>
    %48 = vector.broadcast %5 : vector<1x256xf32> to vector<4x256xf32>
    %49 = arith.mulf %48, %47 : vector<4x256xf32>
    %c0_18 = arith.constant 0 : index
    %c0_19 = arith.constant 0 : index
    %c0_20 = arith.constant 0 : index
    %50 = vector.load %arg7[%c0_18, %c0_19, %c0_20] : memref<1x4x256xf32, #tpu.memory_space<vmem>>, vector<1x4x256xf32>
    %51 = vector.shape_cast %50 : vector<1x4x256xf32> to vector<4x256xf32>
    %52 = vector.shape_cast %49 : vector<4x256xf32> to vector<1x4x256xf32>
    tpu.vector_store %arg7[%c0_18, %c0_19, %c0_20], %52 {strides = array<i32>} : memref<1x4x256xf32, #tpu.memory_space<vmem>>, vector<1x4x256xf32>,
    return
  }
  func.func @transform_0(%arg0: i32, %arg1: i32) -> (i32, i32, i32) {
    %c0_i32 = arith.constant 0 : i32
    %c0_i32_0 = arith.constant 0 : i32
    return %arg0, %c0_i32, %arg1 : i32, i32, i32
  }
  func.func @transform_1(%arg0: i32, %arg1: i32) -> (i32, i32) {
    %c0_i32 = arith.constant 0 : i32
    %c0_i32_0 = arith.constant 0 : i32
    %c0_i32_1 = arith.constant 0 : i32
    return %c0_i32, %c0_i32_0 : i32, i32
  }
  func.func @transform_2(%arg0: i32, %arg1: i32) -> (i32, i32) {
    %c0_i32 = arith.constant 0 : i32
    %c0_i32_0 = arith.constant 0 : i32
    %c0_i32_1 = arith.constant 0 : i32
    return %c0_i32, %c0_i32_0 : i32, i32
  }
  func.func @transform_3(%arg0: i32, %arg1: i32) -> (i32, i32) {
    %c0_i32 = arith.constant 0 : i32
    %c0_i32_0 = arith.constant 0 : i32
    %c0_i32_1 = arith.constant 0 : i32
    return %c0_i32, %c0_i32_0 : i32, i32
  }
  func.func @transform_4(%arg0: i32, %arg1: i32) -> (i32, i32) {
    %c0_i32 = arith.constant 0 : i32
    %c0_i32_0 = arith.constant 0 : i32
    %c0_i32_1 = arith.constant 0 : i32
    return %c0_i32, %c0_i32_0 : i32, i32
  }
  func.func @transform_5(%arg0: i32, %arg1: i32) -> (i32, i32, i32) {
    %c0_i32 = arith.constant 0 : i32
    %c0_i32_0 = arith.constant 0 : i32
    return %arg0, %c0_i32, %arg1 : i32, i32, i32
  }
}

</mosaic_0001>

<llo_original>
// kernel: squeeze_excitation.1
$region0: #{squeeze_excitation.1}
  #allocation0 [shape = 'u32[]', space=smem, size = 0x4, offset = 0x4, fixed_abs, tag = 'smem constant byte address 0x4 - core index']
  #allocation1 [shape = 'u32[72,128]{1,0:T(1,128)}', space=vmem, size = 0x9000, scoped, tag = 'internal scratch']
  %s0 = inlined_call_operand.vmem [shape: f32[2,4,256], index: 0, kind: input, shape index: {}]
  %s1 = inlined_call_operand.vmem [shape: f32[4,1], index: 1, kind: input, shape index: {}]
  %s2 = inlined_call_operand.vmem [shape: f32[4,1], index: 2, kind: input, shape index: {}]
  %s3 = inlined_call_operand.vmem [shape: f32[4,4], index: 3, kind: input, shape index: {}]
  %s4 = inlined_call_operand.vmem [shape: f32[4,1], index: 4, kind: input, shape index: {}]
  %s5 = inlined_call_operand.vmem [shape: f32[2,4,256], index: 5, kind: output, shape index: {}]
  %s6 = sld [smem:[#allocation0]]
  $region53: #{squeeze_excitation.1} parent=0
    _
  %s8 = ssub.s32 1, %s6
  %s9 = scalar_select 0, %s8, %s6
  loop: start=0, step=1, limit=4
  $region2: #{squeeze_excitation.1} parent=0 // loop_pre_header
    _
  $region3: #{squeeze_excitation.1} parent=0 // loop_header
    %s11 = sphi 0, %s15
    %p12 = scmp.ge.s32.totalorder %s11, 4
    %s18 = sphi 0, %s30
    %s19 = sphi 0, %s26
    %s20 = sphi 0, %s18
    %s21 = sphi 0, %s19
    %s22 = sphi 0, %s20
    %s23 = sphi 0, %s21
    %s35 = sphi 0, %s37
    %s38 = sphi 0, %s35
    %s39 = sphi 0, %s38
    %s55 = sphi 0, %s39
    %s59 = sphi 0, %s59
    %s61 = sphi 0, %s59
    %s62 = sphi 0, %s61
    %s76 = sphi 0, %s62
    %s80 = sphi 0, %s80
    %s82 = sphi 0, %s80
    %s83 = sphi 0, %s82
    %s97 = sphi 0, %s83
    %s101 = sphi 0, %s101
    %s103 = sphi 0, %s101
    %s104 = sphi 0, %s103
    %s118 = sphi 0, %s104
    %s122 = sphi 0, %s122
    %s124 = sphi 0, %s122
    %s125 = sphi 0, %s124
    %s139 = sphi 0, %s125
    %s147 = sphi 0, %s149
    %s150 = sphi 0, %s147
    %s151 = sphi 0, %s150
    %s167 = sphi 0, %s151
  $region4: #{squeeze_excitation.1} parent=0 // loop_header_branch
    %14 = sbr.rel (%p12) target = $region8
  $region5: #{squeeze_excitation.1} parent=0 // loop_body
    %s16 = ssub.s32 %s11, 1
    %s17 = ssub.s32 %s11, 2
    %s24 = sadd.s32 1, %s19
    %p25 = scmp.ge.s32.totalorder %s24, 1
    %s26 = scalar_select %p25, 0, %s24
    %s27 = sadd.s32 1, %s18
    %s28 = scalar_select %p25, %s27, %s18
    %p29 = scmp.ge.s32.totalorder %s28, 2
    %s30 = scalar_select %p29, 0, %s28
    %s31 = ssub.s32 %s18, %s30
    %s32 = ssub.s32 %s19, %s26
    %s33 = sor.u32 %s31, %s32
    %p34 = scmp.eq.s32.totalorder %s33, 0
    %s36 = sadd.s32 %s35, 1
    %s37 = scalar_select %p34, %s35, %s36
    %p40 = pneg %p34
    %p41 = scmp.eq.s32.totalorder %s11, 1
    %p42 = por %p40, %p41
    %p43 = scmp.ne.s32.totalorder %s35, %s38
    %p44 = scmp.eq.s32.totalorder %s11, 0
    %p45 = por %p43, %p44
    %p46 = scmp.ne.s32.totalorder %s35, %s38
    %p47 = scmp.eq.s32.totalorder %s16, 1
    %p48 = por %p46, %p47
    %p49 = scmp.ne.s32.totalorder %s38, %s39
    %p50 = scmp.eq.s32.totalorder %s16, 0
    %p51 = por %p49, %p50
    %p52 = scmp.ne.s32.totalorder %s38, %s39
    %p53 = scmp.eq.s32.totalorder %s17, 1
    %p54 = por %p52, %p53
    %p56 = scmp.ne.s32.totalorder %s39, %s55
    %p57 = scmp.eq.s32.totalorder %s17, 0
    %p58 = por %p56, %p57
    %s60 = sadd.s32 %s59, 1
    %p63 = scmp.eq.s32.totalorder %s11, 1
    %p64 = scmp.ne.s32.totalorder %s59, %s61
    %p65 = scmp.eq.s32.totalorder %s11, 0
    %p66 = por %p64, %p65
    %p67 = scmp.ne.s32.totalorder %s59, %s61
    %p68 = scmp.eq.s32.totalorder %s16, 1
    %p69 = por %p67, %p68
    %p70 = scmp.ne.s32.totalorder %s61, %s62
    %p71 = scmp.eq.s32.totalorder %s16, 0
    %p72 = por %p70, %p71
    %p73 = scmp.ne.s32.totalorder %s61, %s62
    %p74 = scmp.eq.s32.totalorder %s17, 1
    %p75 = por %p73, %p74
    %p77 = scmp.ne.s32.totalorder %s62, %s76
    %p78 = scmp.eq.s32.totalorder %s17, 0
    %p79 = por %p77, %p78
    %s81 = sadd.s32 %s80, 1
    %p84 = scmp.eq.s32.totalorder %s11, 1
    %p85 = scmp.ne.s32.totalorder %s80, %s82
    %p86 = scmp.eq.s32.totalorder %s11, 0
    %p87 = por %p85, %p86
    %p88 = scmp.ne.s32.totalorder %s80, %s82
    %p89 = scmp.eq.s32.totalorder %s16, 1
    %p90 = por %p88, %p89
    %p91 = scmp.ne.s32.totalorder %s82, %s83
    %p92 = scmp.eq.s32.totalorder %s16, 0
    %p93 = por %p91, %p92
    %p94 = scmp.ne.s32.totalorder %s82, %s83
    %p95 = scmp.eq.s32.totalorder %s17, 1
    %p96 = por %p94, %p95
    %p98 = scmp.ne.s32.totalorder %s83, %s97
    %p99 = scmp.eq.s32.totalorder %s17, 0
    %p100 = por %p98, %p99
    %s102 = sadd.s32 %s101, 1
    %p105 = scmp.eq.s32.totalorder %s11, 1
    %p106 = scmp.ne.s32.totalorder %s101, %s103
    %p107 = scmp.eq.s32.totalorder %s11, 0
    %p108 = por %p106, %p107
    %p109 = scmp.ne.s32.totalorder %s101, %s103
    %p110 = scmp.eq.s32.totalorder %s16, 1
    %p111 = por %p109, %p110
    %p112 = scmp.ne.s32.totalorder %s103, %s104
    %p113 = scmp.eq.s32.totalorder %s16, 0
    %p114 = por %p112, %p113
    %p115 = scmp.ne.s32.totalorder %s103, %s104
    %p116 = scmp.eq.s32.totalorder %s17, 1
    %p117 = por %p115, %p116
    %p119 = scmp.ne.s32.totalorder %s104, %s118
    %p120 = scmp.eq.s32.totalorder %s17, 0
    %p121 = por %p119, %p120
    %s123 = sadd.s32 %s122, 1
    %p126 = scmp.eq.s32.totalorder %s11, 1
    %p127 = scmp.ne.s32.totalorder %s122, %s124
    %p128 = scmp.eq.s32.totalorder %s11, 0
    %p129 = por %p127, %p128
    %p130 = scmp.ne.s32.totalorder %s122, %s124
    %p131 = scmp.eq.s32.totalorder %s16, 1
    %p132 = por %p130, %p131
    %p133 = scmp.ne.s32.totalorder %s124, %s125
    %p134 = scmp.eq.s32.totalorder %s16, 0
    %p135 = por %p133, %p134
    %p136 = scmp.ne.s32.totalorder %s124, %s125
    %p137 = scmp.eq.s32.totalorder %s17, 1
    %p138 = por %p136, %p137
    %p140 = scmp.ne.s32.totalorder %s125, %s139
    %p141 = scmp.eq.s32.totalorder %s17, 0
    %p142 = por %p140, %p141
    %s143 = ssub.s32 %s18, %s30
    %s144 = ssub.s32 %s19, %s26
    %s145 = sor.u32 %s143, %s144
    %p146 = scmp.eq.s32.totalorder %s145, 0
    %s148 = sadd.s32 %s147, 1
    %s149 = scalar_select %p146, %s147, %s148
    %p152 = pneg %p146
    %p153 = scmp.eq.s32.totalorder %s11, 1
    %p154 = por %p152, %p153
    %p155 = scmp.ne.s32.totalorder %s147, %s150
    %p156 = scmp.eq.s32.totalorder %s11, 0
    %p157 = por %p155, %p156
    %p158 = scmp.ne.s32.totalorder %s147, %s150
    %p159 = scmp.eq.s32.totalorder %s16, 1
    %p160 = por %p158, %p159
    %p161 = scmp.ne.s32.totalorder %s150, %s151
    %p162 = scmp.eq.s32.totalorder %s16, 0
    %p163 = por %p161, %p162
    %p164 = scmp.ne.s32.totalorder %s150, %s151
    %p165 = scmp.eq.s32.totalorder %s17, 1
    %p166 = por %p164, %p165
    %p168 = scmp.ne.s32.totalorder %s151, %s167
    %p169 = scmp.eq.s32.totalorder %s17, 0
    %p170 = por %p168, %p169
    %p171 = scmp.le.s32.totalorder 1, %s11
    %p172 = scmp.lt.s32.totalorder %s11, 3
    %p173 = pnand %p171, %p172
    %p174 = pneg %p173
    // Predicated region
    $region9: #{squeeze_excitation.1} parent=5 // pred_check
      _
    $region10: #{squeeze_excitation.1} parent=5 // pred_check_branch
      %176 = sbr.rel (%p173) target = $region12
    $region11: #{squeeze_excitation.1} parent=5 // pred_region
      %s177 = ssub.s32 %s11, 1
      // Predicated region
      $region13: #{squeeze_excitation.1} parent=11 // pred_check
        %p178 = pneg %p72
      $region14: #{squeeze_excitation.1} parent=11 // pred_check_branch
        %180 = sbr.rel (%p178) target = $region16
      $region15: #{squeeze_excitation.1} parent=11 // pred_region
        _
      $region16: #{squeeze_excitation.1} parent=11 // pred_fallthru
        _
      // Predicated region
      $region17: #{squeeze_excitation.1} parent=11 // pred_check
        %p181 = pneg %p93
      $region18: #{squeeze_excitation.1} parent=11 // pred_check_branch
        %183 = sbr.rel (%p181) target = $region20
      $region19: #{squeeze_excitation.1} parent=11 // pred_region
        _
      $region20: #{squeeze_excitation.1} parent=11 // pred_fallthru
        _
      // Predicated region
      $region21: #{squeeze_excitation.1} parent=11 // pred_check
        %p184 = pneg %p114
      $region22: #{squeeze_excitation.1} parent=11 // pred_check_branch
        %186 = sbr.rel (%p184) target = $region24
      $region23: #{squeeze_excitation.1} parent=11 // pred_region
        _
      $region24: #{squeeze_excitation.1} parent=11 // pred_fallthru
        _
      // Predicated region
      $region25: #{squeeze_excitation.1} parent=11 // pred_check
        %p187 = pneg %p135
      $region26: #{squeeze_excitation.1} parent=11 // pred_check_branch
        %189 = sbr.rel (%p187) target = $region28
      $region27: #{squeeze_excitation.1} parent=11 // pred_region
        _
      $region28: #{squeeze_excitation.1} parent=11 // pred_fallthru
        _
    $region12: #{squeeze_excitation.1} parent=5 // pred_fallthru
      _
    %p190 = scmp.lt.s32.totalorder %s11, 2
    // Predicated region
    $region29: #{squeeze_excitation.1} parent=5 // pred_check
      %p191 = pneg %p190
    $region30: #{squeeze_excitation.1} parent=5 // pred_check_branch
      %193 = sbr.rel (%p191) target = $region32
    $region31: #{squeeze_excitation.1} parent=5 // pred_region
      // Predicated region
      $region33: #{squeeze_excitation.1} parent=31 // pred_check
        %p194 = pneg %p45
      $region34: #{squeeze_excitation.1} parent=31 // pred_check_branch
        %196 = sbr.rel (%p194) target = $region36
      $region35: #{squeeze_excitation.1} parent=31 // pred_region
        %s197 = smul.u32 2, %s19
        %p198 = scmp.lt.s32.totalorder %s18, 1
        %s199 = scalar_select %p198, %s18, 1
        %p200 = scmp.lt.s32.totalorder %s197, 1
        %s201 = scalar_select %p200, %s197, 1
        %s202 = smul.addr %s199, 2
        %s203 = sadd.s32 %s201, %s202
        %s204 = smul.addr %s203, 4
        %s205 = scalar_lea.vmem %s0, %s204
        %s206 = smul.u32 2, %s19
      $region36: #{squeeze_excitation.1} parent=31 // pred_fallthru
        _
    $region32: #{squeeze_excitation.1} parent=5 // pred_fallthru
      _
    %p207 = scmp.le.s32.totalorder 1, %s11
    %p208 = scmp.lt.s32.totalorder %s11, 3
    %p209 = pnand %p207, %p208
    %p210 = pneg %p209
    // Predicated region
    $region37: #{squeeze_excitation.1} parent=5 // pred_check
      _
    $region38: #{squeeze_excitation.1} parent=5 // pred_check_branch
      %212 = sbr.rel (%p209) target = $region40
    $region39: #{squeeze_excitation.1} parent=5 // pred_region
      %s213 = ssub.s32 %s11, 1
      %s214 = smul.u32 2, %s21
      %p215 = scmp.lt.s32.totalorder %s20, 1
      %s216 = scalar_select %p215, %s20, 1
      %p217 = scmp.lt.s32.totalorder %s214, 1
      %s218 = scalar_select %p217, %s214, 1
      %s219 = smul.addr %s216, 2
      %s220 = sadd.s32 %s218, %s219
      %s221 = smul.addr %s220, 4
      %s222 = scalar_lea.vmem %s0, %s221
      %p223 = pneg %p51
      %p224 = pneg %p48
      %p225 = pneg %p72
      %p226 = pneg %p69
      %p227 = pneg %p93
      %p228 = pneg %p90
      %p229 = pneg %p114
      %p230 = pneg %p111
      %p231 = pneg %p135
      %p232 = pneg %p132
      %p233 = pneg %p163
      %p234 = pneg %p160
      %s235 = smul.u32 2, %s21
      %p236 = scmp.lt.s32.totalorder %s20, 1
      %s237 = scalar_select %p236, %s20, 1
      %p238 = scmp.lt.s32.totalorder %s235, 1
      %s239 = scalar_select %p238, %s235, 1
      %s240 = smul.addr %s237, 2
      %s241 = sadd.s32 %s239, %s240
      %s242 = smul.addr %s241, 4
      %s243 = scalar_lea.vmem %s5, %s242
      %s244 = smul.u32 2, %s21
      %p245 = scmp.lt.s32.totalorder %s20, 1
      %s246 = scalar_select %p245, %s20, 1
      %p247 = scmp.lt.s32.totalorder %s244, 1
      %s248 = scalar_select %p247, %s244, 1
      %s249 = smul.addr %s246, 2
      %s250 = sadd.s32 %s248, %s249
      %s251 = smul.addr %s250, 4
      %s252 = scalar_lea.vmem %s0, %s251
      %s253 = smul.u32 2, %s21
      %s254 = smul.u32 2, %s21
      %p255 = scmp.lt.s32.totalorder %s20, 1
      %s256 = scalar_select %p255, %s20, 1
      %p257 = scmp.lt.s32.totalorder %s254, 1
      %s258 = scalar_select %p257, %s254, 1
      %s259 = smul.addr %s256, 2
      %s260 = sadd.s32 %s258, %s259
      %s261 = smul.addr %s260, 4
      %s262 = scalar_lea.vmem %s5, %s261
      %s263 = smul.u32 2, %s21
      %v264 = vld [vmem:[%s252] sm:$0xff]
      %266 = vst [vmem:[#allocation1] ss:$2 sm:$0xff] %v264
      %v267 = vld.sshfl [vmem:[#allocation1] sm:$0xff pattern:$0x75316420]
      %v268 = vld.sshfl [vmem:[#allocation1 + $0x8] sm:$0xff pattern:$0x75316420]
      %vm271 = vcmask 1043456
      %v272 = vsel %vm271, %v267, 0.0
      %v273 = vrot.slane %v272, 4
      %v274 = vadd.f32 %v272, %v273
      %v275 = vrot.slane %v274, 2
      %v276 = vadd.f32 %v274, %v275
      %v277 = vrot.slane %v276, 1
      %v278 = vadd.f32 %v276, %v277
      %v279 = vsel %vm271, %v268, 0.0
      %v280 = vrot.slane %v279, 4
      %v281 = vadd.f32 %v279, %v280
      %v282 = vrot.slane %v281, 2
      %v283 = vadd.f32 %v281, %v282
      %v284 = vrot.slane %v283, 1
      %v285 = vadd.f32 %v283, %v284
      %v286 = vrcp.pop 4.0
      %v287 = vmul.f32 4.0, %v286
      %v288 = vsub.f32 1.0, %v287
      %v289 = vmul.f32 %v286, %v288
      %v290 = vadd.f32 %v286, %v289
      %vm291 = vweird.f32 %v286
      %v292 = vsel %vm291, %v286, %v290
      %v293 = vmul.f32 %v278, %v292
      %v294 = vmul.f32 %v285, %v292
      %v295 = vld [vmem:[%s1] sm:$0xf]
      %v296 = vld [vmem:[%s2] sm:$0xf]
      %298 = vset.pattern.permute.xlu0 0
      %299 = vperm.xlu0 %298, %v295
      %v300 = vpop.permute.xlu0 %299
      %v302 = vmul.f32 %v300, %v293
      %v303 = vmul.f32 %v300, %v294
      %305 = vset.pattern.permute.xlu0 0
      %306 = vperm.xlu0 %305, %v296
      %v307 = vpop.permute.xlu0 %306
      %v309 = vadd.f32 %v302, %v307
      %v310 = vadd.f32 %v303, %v307
      %v311 = vmax.f32 %v309, 0.0
      %v312 = vmax.f32 %v310, 0.0
      %v313 = vld [vmem:[%s3] sm:$0xf]
      %315 = vset.pattern.permute.xlu0 0
      %316 = vperm.xlu0 %315, %v313
      %v317 = vpop.permute.xlu0 %316
      %v319 = vperm.slane %v311, 0
      %v320 = vperm.slane %v312, 0
      %v321 = vmul.f32 %v317, %v319
      %v322 = vmul.f32 %v317, %v320
      %323 = vset.pattern.permute.xlu0 1
      %324 = vperm.xlu0 %323, %v313
      %v325 = vpop.permute.xlu0 %324
      %v327 = vperm.slane %v311, 1
      %v328 = vperm.slane %v312, 1
      %v329 = vmul.f32 %v325, %v327
      %v330 = vmul.f32 %v325, %v328
      %v331 = vadd.f32 %v321, %v329
      %v332 = vadd.f32 %v322, %v330
      %333 = vset.pattern.permute.xlu0 2
      %334 = vperm.xlu0 %333, %v313
      %v335 = vpop.permute.xlu0 %334
      %v337 = vperm.slane %v311, 2
      %v338 = vperm.slane %v312, 2
      %v339 = vmul.f32 %v335, %v337
      %v340 = vmul.f32 %v335, %v338
      %v341 = vadd.f32 %v331, %v339
      %v342 = vadd.f32 %v332, %v340
      %343 = vset.pattern.permute.xlu0 3
      %344 = vperm.xlu0 %343, %v313
      %v345 = vpop.permute.xlu0 %344
      %v347 = vperm.slane %v311, 3
      %v348 = vperm.slane %v312, 3
      %v349 = vmul.f32 %v345, %v347
      %v350 = vmul.f32 %v345, %v348
      %v351 = vadd.f32 %v341, %v349
      %v352 = vadd.f32 %v342, %v350
      %v353 = vld [vmem:[%s4] sm:$0xf]
      %355 = vset.pattern.permute.xlu0 0
      %356 = vperm.xlu0 %355, %v353
      %v357 = vpop.permute.xlu0 %356
      %v359 = vadd.f32 %v351, %v357
      %v360 = vadd.f32 %v352, %v357
      %v361 = vsub.f32 0.0, %v359
      %v362 = vsub.f32 0.0, %v360
      %v363 = vmul.f32 %v361, 1.442695
      %v364 = vpow.pop %v363
      %v365 = vmul.f32 %v362, 1.442695
      %v366 = vpow.pop %v365
      %v367 = vadd.f32 %v364, 1.0
      %v368 = vadd.f32 %v366, 1.0
      %v369 = vrcp.pop %v367
      %v370 = vmul.f32 %v367, %v369
      %v371 = vsub.f32 1.0, %v370
      %v372 = vmul.f32 %v369, %v371
      %v373 = vadd.f32 %v369, %v372
      %vm374 = vweird.f32 %v367
      %vm375 = vweird.f32 %v369
      %vm376 = vmor %vm374, %vm375
      %v377 = vsel %vm376, %v369, %v373
      %v378 = vand.u32 2147483647, %v367
      %vm379 = vcmp.eq.f32.partialorder %v378, 8.507059e+37
      %v380 = vand.u32 %v367, 2147483648
      %v381 = vor.u32 1.1754944e-38, %v380
      %v382 = vsel %vm379, %v381, %v377
      %v383 = vmul.f32 1.0, %v382
      %v384 = vrcp.pop %v368
      %v385 = vmul.f32 %v368, %v384
      %v386 = vsub.f32 1.0, %v385
      %v387 = vmul.f32 %v384, %v386
      %v388 = vadd.f32 %v384, %v387
      %vm389 = vweird.f32 %v368
      %vm390 = vweird.f32 %v384
      %vm391 = vmor %vm389, %vm390
      %v392 = vsel %vm391, %v384, %v388
      %v393 = vand.u32 2147483647, %v368
      %vm394 = vcmp.eq.f32.partialorder %v393, 8.507059e+37
      %v395 = vand.u32 %v368, 2147483648
      %v396 = vor.u32 1.1754944e-38, %v395
      %v397 = vsel %vm394, %v396, %v392
      %v398 = vmul.f32 1.0, %v397
      %v399 = vmul.f32 %v293, %v383
      %v400 = vmul.f32 %v294, %v398
      %v403 = vrot.slane %v400, 4
      %v404 = vsel %vm271, %v399, %v403
      %406 = vst [vmem:[%s262] sm:$0xff] %v404
      %s407 = smul.u32 2, %s21
      %p408 = scmp.lt.s32.totalorder %s20, 1
      %s409 = scalar_select %p408, %s20, 1
      %p410 = scmp.lt.s32.totalorder %s407, 1
      %s411 = scalar_select %p410, %s407, 1
      %s412 = smul.addr %s409, 2
      %s413 = sadd.s32 %s411, %s412
      %s414 = smul.addr %s413, 4
      %s415 = scalar_lea.vmem %s5, %s414
      // Predicated region
      $region41: #{squeeze_excitation.1} parent=39 // pred_check
        %p416 = pneg %p160
      $region42: #{squeeze_excitation.1} parent=39 // pred_check_branch
        %418 = sbr.rel (%p416) target = $region44
      $region43: #{squeeze_excitation.1} parent=39 // pred_region
        %s419 = smul.u32 2, %s21
      $region44: #{squeeze_excitation.1} parent=39 // pred_fallthru
        _
    $region40: #{squeeze_excitation.1} parent=5 // pred_fallthru
      _
    %p420 = scmp.le.s32.totalorder 2, %s11
    // Predicated region
    $region45: #{squeeze_excitation.1} parent=5 // pred_check
      %p421 = pneg %p420
    $region46: #{squeeze_excitation.1} parent=5 // pred_check_branch
      %423 = sbr.rel (%p421) target = $region48
    $region47: #{squeeze_excitation.1} parent=5 // pred_region
      %s424 = ssub.s32 %s11, 2
      // Predicated region
      $region49: #{squeeze_excitation.1} parent=47 // pred_check
        %p425 = pneg %p166
      $region50: #{squeeze_excitation.1} parent=47 // pred_check_branch
        %427 = sbr.rel (%p425) target = $region52
      $region51: #{squeeze_excitation.1} parent=47 // pred_region
        %s428 = smul.u32 2, %s23
        %p429 = scmp.lt.s32.totalorder %s22, 1
        %s430 = scalar_select %p429, %s22, 1
        %p431 = scmp.lt.s32.totalorder %s428, 1
        %s432 = scalar_select %p431, %s428, 1
        %s433 = smul.addr %s430, 2
        %s434 = sadd.s32 %s432, %s433
        %s435 = smul.addr %s434, 4
        %s436 = scalar_lea.vmem %s5, %s435
      $region52: #{squeeze_excitation.1} parent=47 // pred_fallthru
        _
    $region48: #{squeeze_excitation.1} parent=5 // pred_fallthru
      _
  $region6: #{squeeze_excitation.1} parent=0 // loop_footer
    %s15 = sadd.s32 1, %s11
  $region7: #{squeeze_excitation.1} parent=0 // loop_footer_branch
    %10 = sbr.rel target = $region3
  $region8: #{squeeze_excitation.1} parent=0 // loop_exit
    _

</llo_original>
